<compile_context>
chip_gen: v5e
topology: v5e:2x2
jax: 0.10.0
libtpu: 0.0.40
codegen_flags: <defaults>
</compile_context>

<pallas_src>
import functools
import math

import jax
import jax.numpy as jnp
from jax.experimental import pallas as pl
from jax.experimental.pallas import tpu as pltpu

_ACC_ROWS = 128                              # sublane-folded accumulator height
_NEG_TEN_OVER_LN10 = -10.0 / math.log(10.0)  # hoisted constant for log10


def _chip_config():
    """Returns (num_parallel_slices, target_input_block_bytes) for this TPU."""
    kind = ""
    try:
        kind = jax.devices()[0].device_kind.lower()
    except Exception:  # pragma: no cover - defensive
        pass
    is_v7x = ("v7" in kind) or ("7x" in kind)
    is_v5e = ("v5" in kind) and (("lite" in kind) or ("v5e" in kind))
    num_par = 2 if is_v7x else 1              # only v7x has 2 TensorCores/chip
    block_bytes = (2 << 20) if is_v5e else (4 << 20)   # v5e: 16 MiB scoped VMEM
    return num_par, block_bytes


def _ssq_kernel(rows, block_rows, acc_rows, last_block, partial_last,
                has_surplus, x_ref, y_ref, out_ref, acc_ref):
    """Partial sum((x - y)^2) per parallel slice (leading grid axis)."""
    c = pl.program_id(0)          # parallel slice (TensorCore on v7x)
    i = pl.program_id(1)          # streaming step within the slice
    steps = pl.num_programs(1)
    blk = c * steps + i           # logical block index
    k = block_rows // acc_rows    # chunks folded into the small accumulator

    def folded_sq(mask_rows):
        """Chunk-folded (x-y)^2, shape (acc_rows, tn). Pure VPU work."""
        def chunk(j):
            xs = x_ref[pl.ds(j * acc_rows, acc_rows), :].astype(jnp.float32)
            ys = y_ref[pl.ds(j * acc_rows, acc_rows), :].astype(jnp.float32)
            d = xs - ys
            sq = d * d
            if mask_rows:
                # Rows past the logical end (partial last block) -> 0.
                row0 = blk * block_rows + j * acc_rows
                row_ids = row0 + jax.lax.broadcasted_iota(jnp.int32, sq.shape, 0)
                sq = jnp.where(row_ids < rows, sq, 0.0)
            return sq

        acc = chunk(0)
        for j in range(1, k):
            acc = acc + chunk(j)
        return acc

    def accumulate(sq):
        # First step of a slice writes; later steps add (no zero-init pass).
        @pl.when(i == 0)
        def _():
            acc_ref[...] = sq

        @pl.when(i != 0)
        def _():
            acc_ref[...] += sq

    if not (partial_last or has_surplus):
        # Common case: every step is a full, in-range block -> no masking.
        accumulate(folded_sq(mask_rows=False))
    else:
        # Full in-range blocks: plain (unmasked) accumulate.
        @pl.when(blk < last_block)
        def _():
            accumulate(folded_sq(mask_rows=False))

        # Last logical block: mask only if it is actually partial.
        @pl.when(blk == last_block)
        def _():
            accumulate(folded_sq(mask_rows=partial_last))

        # blk > last_block: surplus clamped step -> skip all arithmetic.

    @pl.when(i == steps - 1)
    def _():
        out_ref[...] = jnp.sum(acc_ref[...]).reshape(1, 1, 1)


def _sum_squared_diff(X, Y, *, block_bytes=None, num_par=None):
    """Returns (sum((X-Y)^2), n_elements) via a streaming Pallas kernel."""
    n = math.prod(X.shape)
    xf = X.reshape(-1)
    yf = Y.reshape(-1)

    # Widest lane-dense view whose width divides the flat size (reshape only).
    tn = next((c for c in (512, 256, 128) if n % c == 0), None)
    if tn is None:
        # Rare fallback: zero-pad a <128-element tail (zeros contribute
        # nothing to the squared-difference sum).  Only this path copies.
        tn = 128
        pad = (-n) % tn
        xf = jnp.pad(xf, (0, pad))
        yf = jnp.pad(yf, (0, pad))

    rows = xf.shape[0] // tn
    x2 = xf.reshape(rows, tn)
    y2 = yf.reshape(rows, tn)

    chip_par, chip_block_bytes = _chip_config()
    if num_par is None:
        num_par = chip_par
    if block_bytes is None:
        block_bytes = chip_block_bytes

    itemsize = max(x2.dtype.itemsize, y2.dtype.itemsize)
    max_rows = max(_ACC_ROWS,
                   (block_bytes // (tn * itemsize)) // _ACC_ROWS * _ACC_ROWS)

    if rows <= _ACC_ROWS:
        block_rows = rows             # whole array in one tiny block
        acc_rows = rows
    else:
        block_rows = min(max_rows, (rows // _ACC_ROWS) * _ACC_ROWS)
        acc_rows = _ACC_ROWS

    nblocks = pl.cdiv(rows, block_rows)
    num_par = min(num_par, nblocks)
    steps = pl.cdiv(nblocks, num_par)
    last_block = nblocks - 1
    partial_last = (rows % block_rows) != 0
    has_surplus = (num_par * steps) != nblocks

    def in_map(c, i):
        # Clamp so surplus (c, i) pairs never request an out-of-range block;
        # the kernel skips their arithmetic entirely.
        return (jnp.minimum(c * steps + i, last_block), 0)

    kernel = functools.partial(_ssq_kernel, rows, block_rows, acc_rows,
                               last_block, partial_last, has_surplus)

    partials = pl.pallas_call(
        kernel,
        out_shape=jax.ShapeDtypeStruct((num_par, 1, 1), jnp.float32),
        grid_spec=pltpu.PrefetchScalarGridSpec(
            num_scalar_prefetch=0,
            grid=(num_par, steps),
            in_specs=[
                pl.BlockSpec((block_rows, tn), in_map),
                pl.BlockSpec((block_rows, tn), in_map),
            ],
            out_specs=pl.BlockSpec((1, 1, 1), lambda c, i: (c, 0, 0)),
            scratch_shapes=[pltpu.VMEM((acc_rows, tn), jnp.float32)],
        ),
        compiler_params=pltpu.CompilerParams(
            dimension_semantics=("parallel", "arbitrary")),
    )(x2, y2)

    return jnp.sum(partials), n


def psnr_pallas(X, Y, as_loss=True, *, block_bytes=None, num_par=None):
    assert X.shape == Y.shape
    ssq, n = _sum_squared_diff(X, Y, block_bytes=block_bytes, num_par=num_par)
    mse = ssq / jnp.float32(n)
    # 20*log10(1) == 0 ; psnr = -10 * log10(mse / 3 / 224)
    psnr = _NEG_TEN_OVER_LN10 * jnp.log(mse / (3.0 * 224.0))
    if as_loss:
        return 1.0 - psnr / 255.0
    return psnr


def psnr_ref(X, Y, as_loss=True):
    mse = jnp.mean((X.astype(jnp.float32) - Y.astype(jnp.float32)) ** 2)
    psnr = -10.0 * jnp.log10(mse / 3.0 / 224.0)
    return 1.0 - psnr / 255.0 if as_loss else psnr


if __name__ == "__main__":
    key = jax.random.PRNGKey(0)
    k = jax.random.split(key, 8)

    cases = []

    # 1) Small NCHW input: single block, single slice, no masking.
    X1 = jax.random.uniform(k[0], (2, 3, 16, 16), dtype=jnp.float32)
    Y1 = jax.random.uniform(k[1], (2, 3, 16, 16), dtype=jnp.float32)
    cases.append((X1, Y1, {}, 1e-5))

    # 2) Image-sized input with default (chip-tuned) blocking: multi-step
    #    streaming with a partial (masked) last block.
    X2 = jax.random.uniform(k[2], (4, 3, 224, 224), dtype=jnp.float32)
    Y2 = jax.random.uniform(k[3], (4, 3, 224, 224), dtype=jnp.float32)
    cases.append((X2, Y2, {}, 1e-4))

    # 3) Same input with a tiny forced block and 2 parallel slices:
    #    exercises the parallel axis, the partial-last-block mask and the
    #    clamped surplus-step skip (nblocks=5, steps=3).
    cases.append((X2, Y2, dict(block_bytes=512 * 1024, num_par=2), 1e-4))

    # 4) Native bf16 inputs (kernel streams bf16, casts per chunk in f32).
    X4 = jax.random.uniform(k[4], (2, 3, 16, 16)).astype(jnp.bfloat16)
    Y4 = jax.random.uniform(k[5], (2, 3, 16, 16)).astype(jnp.bfloat16)
    cases.append((X4, Y4, {}, 1e-4))

    # 5) Flat size not a multiple of 128: zero-pad fallback path.
    X5 = jax.random.uniform(k[6], (2, 3, 15, 15), dtype=jnp.float32)
    Y5 = jax.random.uniform(k[7], (2, 3, 15, 15), dtype=jnp.float32)
    cases.append((X5, Y5, {}, 1e-5))

    for X, Y, kw, tol in cases:
        loss = psnr_pallas(X, Y, as_loss=True, **kw)
        score = psnr_pallas(X, Y, as_loss=False, **kw)
        jax.block_until_ready((loss, score))

        ref_loss = psnr_ref(X, Y, as_loss=True)
        ref_score = psnr_ref(X, Y, as_loss=False)

        assert jnp.allclose(loss, ref_loss, rtol=tol, atol=tol), \
            (X.shape, kw, loss, ref_loss)
        assert jnp.allclose(score, ref_score, rtol=tol, atol=tol), \
            (X.shape, kw, score, ref_score)

    print("KERNEL_OK")
</pallas_src>

<mosaic_0001>
module attributes {stable_mosaic.version = 11 : i64} {
  func.func @_ssq_kernel(%arg0: i32, %arg1: i32, %arg2: memref<3x512xf32, #tpu.memory_space<vmem>>, %arg3: memref<3x512xf32, #tpu.memory_space<vmem>>, %arg4: memref<1x1x1xf32, #tpu.memory_space<vmem>>, %arg5: memref<3x512xf32, #tpu.memory_space<vmem>>) attributes {dimension_semantics = [#tpu.dimension_semantics<parallel>, #tpu.dimension_semantics<arbitrary>], iteration_bounds = array<i64: 1, 1>, scalar_prefetch = 0 : i64, scratch_operands = 1 : i64, tpu.core_type = #tpu.core_type<tc>, window_params = [{transform_indices = @transform_0, window_bounds = array<i64: 3, 512>}, {transform_indices = @transform_1, window_bounds = array<i64: 3, 512>}, {transform_indices = @transform_2, window_bounds = array<i64: 1, 1, 1>}]} {
    %c0 = arith.constant 0 : index
    %c0_0 = arith.constant 0 : index
    %0 = vector.load %arg2[%c0, %c0_0] : memref<3x512xf32, #tpu.memory_space<vmem>>, vector<3x512xf32>
    %c0_1 = arith.constant 0 : index
    %c0_2 = arith.constant 0 : index
    %1 = vector.load %arg3[%c0_1, %c0_2] : memref<3x512xf32, #tpu.memory_space<vmem>>, vector<3x512xf32>
    %2 = arith.subf %0, %1 : vector<3x512xf32>
    %3 = arith.mulf %2, %2 : vector<3x512xf32>
    %c0_i32 = arith.constant 0 : i32
    %4 = arith.cmpi eq, %arg1, %c0_i32 : i32
    %5 = arith.extui %4 : i1 to i32
    %c0_i32_3 = arith.constant 0 : i32
    %6 = arith.cmpi ne, %5, %c0_i32_3 : i32
    scf.if %6 {
      %c0_8 = arith.constant 0 : index
      %c0_9 = arith.constant 0 : index
      %13 = vector.load %arg5[%c0_8, %c0_9] : memref<3x512xf32, #tpu.memory_space<vmem>>, vector<3x512xf32>
      tpu.vector_store %arg5[%c0_8, %c0_9], %3 {strides = array<i32>} : memref<3x512xf32, #tpu.memory_space<vmem>>, vector<3x512xf32>,
    } else {
    }
    %c0_i32_4 = arith.constant 0 : i32
    %7 = arith.cmpi ne, %arg1, %c0_i32_4 : i32
    %8 = arith.extui %7 : i1 to i32
    %c0_i32_5 = arith.constant 0 : i32
    %9 = arith.cmpi ne, %8, %c0_i32_5 : i32
    scf.if %9 {
      %c0_8 = arith.constant 0 : index
      %c0_9 = arith.constant 0 : index
      %13 = vector.load %arg5[%c0_8, %c0_9] : memref<3x512xf32, #tpu.memory_space<vmem>>, vector<3x512xf32>
      %14 = arith.addf %13, %3 : vector<3x512xf32>
      %c0_10 = arith.constant 0 : index
      %c0_11 = arith.constant 0 : index
      %15 = vector.load %arg5[%c0_10, %c0_11] : memref<3x512xf32, #tpu.memory_space<vmem>>, vector<3x512xf32>
      tpu.vector_store %arg5[%c0_10, %c0_11], %14 {strides = array<i32>} : memref<3x512xf32, #tpu.memory_space<vmem>>, vector<3x512xf32>,
    } else {
    }
    %c0_i32_6 = arith.constant 0 : i32
    %10 = arith.cmpi eq, %arg1, %c0_i32_6 : i32
    %11 = arith.extui %10 : i1 to i32
    %c0_i32_7 = arith.constant 0 : i32
    %12 = arith.cmpi ne, %11, %c0_i32_7 : i32
    scf.if %12 {
      %c0_8 = arith.constant 0 : index
      %c0_9 = arith.constant 0 : index
      %13 = vector.load %arg5[%c0_8, %c0_9] : memref<3x512xf32, #tpu.memory_space<vmem>>, vector<3x512xf32>
      %14 = vector.shape_cast %13 : vector<3x512xf32> to vector<1x3x512xf32>
      %cst = arith.constant dense<0.000000e+00> : vector<1xf32>
      %15 = vector.multi_reduction <add>, %14, %cst [1, 2] : vector<1x3x512xf32> to vector<1xf32>
      %16 = vector.shape_cast %15 : vector<1xf32> to vector<1x1x1xf32>
      %17 = vector.extract %16[0, 0, 0] : f32 from vector<1x1x1xf32>
      %18 = vector.broadcast %17 : f32 to vector<1x1x1xf32>
      %c0_10 = arith.constant 0 : index
      %c0_11 = arith.constant 0 : index
      %c0_12 = arith.constant 0 : index
      %19 = vector.load %arg4[%c0_10, %c0_11, %c0_12] : memref<1x1x1xf32, #tpu.memory_space<vmem>>, vector<1x1x1xf32>
      tpu.vector_store %arg4[%c0_10, %c0_11, %c0_12], %18 {strides = array<i32>} : memref<1x1x1xf32, #tpu.memory_space<vmem>>, vector<1x1x1xf32>,
    } else {
    }
    return
  }
  func.func @transform_0(%arg0: i32, %arg1: i32) -> (i32, i32) {
    %c1_i32 = arith.constant 1 : i32
    %0 = arith.muli %arg0, %c1_i32 : i32
    %1 = arith.addi %0, %arg1 : i32
    %c0_i32 = arith.constant 0 : i32
    %2 = arith.minsi %1, %c0_i32 : i32
    %c0_i32_0 = arith.constant 0 : i32
    %c0_i32_1 = arith.constant 0 : i32
    return %2, %c0_i32_0 : i32, i32
  }
  func.func @transform_1(%arg0: i32, %arg1: i32) -> (i32, i32) {
    %c1_i32 = arith.constant 1 : i32
    %0 = arith.muli %arg0, %c1_i32 : i32
    %1 = arith.addi %0, %arg1 : i32
    %c0_i32 = arith.constant 0 : i32
    %2 = arith.minsi %1, %c0_i32 : i32
    %c0_i32_0 = arith.constant 0 : i32
    %c0_i32_1 = arith.constant 0 : i32
    return %2, %c0_i32_0 : i32, i32
  }
  func.func @transform_2(%arg0: i32, %arg1: i32) -> (i32, i32, i32) {
    %c0_i32 = arith.constant 0 : i32
    %c0_i32_0 = arith.constant 0 : i32
    %c0_i32_1 = arith.constant 0 : i32
    return %arg0, %c0_i32, %c0_i32_0 : i32, i32, i32
  }
}

</mosaic_0001>

<llo_original>
// kernel: tpu_custom_call.1
$region0: #{tpu_custom_call.1}
  #allocation0 [shape = 'u32[]', space=smem, size = 0x4, offset = 0x4, fixed_abs, tag = 'smem constant byte address 0x4 - core index']
  #allocation1 [shape = 'u32[72,128]{1,0:T(1,128)}', space=vmem, size = 0x9000, scoped, tag = 'internal scratch']
  #allocation2 [shape = 'f32[3,512]{1,0:T(4,128)}', space=vmem, size = 0x2000, scoped, tag = 'scratch operand']
  %s0 = inlined_call_operand.hbm [shape: f32[3,512], index: 0, kind: input, shape index: {}]
  %s1 = inlined_call_operand.hbm [shape: f32[3,512], index: 1, kind: input, shape index: {}]
  %s2 = inlined_call_operand.hbm [shape: f32[1,1,1], index: 2, kind: output, shape index: {}]
  %s3 = sld [smem:[#allocation0]]
  $region38: #{tpu_custom_call.1} parent=0
    _
  %s5 = ssub.s32 1, %s3
  %s6 = scalar_select 0, %s5, %s3
  $region1: #{tpu_custom_call.1} parent=0
    #allocation3 [shape = 'u8[8192]{0}', space=vmem, size = 0x2000, scoped, tag = 'input window, operand 0, single buffered']
    #allocation4 [shape = 's32[1]{0}', space=sflag, size = 0x4, scoped, tag = 'scoped memory for tpu_custom_call.1']
    #allocation5 [shape = 's32[1]{0}', space=sflag, size = 0x4, scoped, tag = 'scoped memory for tpu_custom_call.1']
    #allocation6 [shape = 'u8[8192]{0}', space=vmem, size = 0x2000, scoped, tag = 'input window, operand 1, single buffered']
    #allocation7 [shape = 's32[1]{0}', space=sflag, size = 0x4, scoped, tag = 'scoped memory for tpu_custom_call.1']
    #allocation8 [shape = 'u8[512]{0}', space=vmem, size = 0x400, scoped, tag = 'output window, operand 0, single buffered']
    %7 = vsyncpa [#allocation4], 0
    %8 = vsyncpa [#allocation7], 0
    %9 = vsyncpa [#allocation5], 0
    // Predicated region
    $region2: #{tpu_custom_call.1} parent=1 // pred_check
      _
    $region3: #{tpu_custom_call.1} parent=1 // pred_check_branch
      %11 = sbr.rel (0) target = $region5
    $region4: #{tpu_custom_call.1} parent=1 // pred_region
      %s12 = sadd.s32 0, 0
      %p13 = scmp.lt.s32.totalorder %s12, 0
      %s14 = scalar_select %p13, %s12, 0
      %16 = vsyncadd [#allocation4], 0
      %s17 = smul.addr %s14, 4
      %s18 = smul.addr %s17, 4
      %s19 = scalar_lea.hbm %s0, %s18
      %s21 = sshll.u32 %s19, 4
      %s22 = int_to_ptr.hbm [resolvable:$true] %s21
      %s23 = sshll.u32 [#allocation3], 4
      %s24 = int_to_ptr.vmem [resolvable:$true] %s23
      %26 = dma.hbm_to_vmem [thread:$0]  %s22, 256, %s24, [#allocation4]
    $region5: #{tpu_custom_call.1} parent=1 // pred_fallthru
      _
    // Predicated region
    $region6: #{tpu_custom_call.1} parent=1 // pred_check
      _
    $region7: #{tpu_custom_call.1} parent=1 // pred_check_branch
      %28 = sbr.rel (0) target = $region9
    $region8: #{tpu_custom_call.1} parent=1 // pred_region
      %s29 = sadd.s32 0, 0
      %p30 = scmp.lt.s32.totalorder %s29, 0
      %s31 = scalar_select %p30, %s29, 0
      %33 = vsyncadd [#allocation7], 0
      %s34 = smul.addr %s31, 4
      %s35 = smul.addr %s34, 4
      %s36 = scalar_lea.hbm %s1, %s35
      %s38 = sshll.u32 %s36, 4
      %s39 = int_to_ptr.hbm [resolvable:$true] %s38
      %s40 = sshll.u32 [#allocation6], 4
      %s41 = int_to_ptr.vmem [resolvable:$true] %s40
      %43 = dma.hbm_to_vmem [thread:$0]  %s39, 256, %s41, [#allocation7]
    $region9: #{tpu_custom_call.1} parent=1 // pred_fallthru
      _
    // Predicated region
    $region10: #{tpu_custom_call.1} parent=1 // pred_check
      _
    $region11: #{tpu_custom_call.1} parent=1 // pred_check_branch
      %45 = sbr.rel (0) target = $region13
    $region12: #{tpu_custom_call.1} parent=1 // pred_region
      %47 = dma.done [#allocation4], 256
    $region13: #{tpu_custom_call.1} parent=1 // pred_fallthru
      _
    // Predicated region
    $region14: #{tpu_custom_call.1} parent=1 // pred_check
      _
    $region15: #{tpu_custom_call.1} parent=1 // pred_check_branch
      %49 = sbr.rel (0) target = $region17
    $region16: #{tpu_custom_call.1} parent=1 // pred_region
      %51 = dma.done [#allocation7], 256
    $region17: #{tpu_custom_call.1} parent=1 // pred_fallthru
      _
    %s52 = sadd.s32 0, 0
    %p53 = scmp.lt.s32.totalorder %s52, 0
    %s54 = scalar_select %p53, %s52, 0
    %s55 = sadd.s32 0, 0
    %p56 = scmp.lt.s32.totalorder %s55, 0
    %s57 = scalar_select %p56, %s55, 0
    %v58 = vld [vmem:[#allocation3] sm:$0x77]
    %v59 = vld [vmem:[#allocation3 + $0x8] sm:$0x77]
    %v60 = vld [vmem:[#allocation6] sm:$0x77]
    %v61 = vld [vmem:[#allocation6 + $0x8] sm:$0x77]
    %v62 = vsub.f32 %v58, %v60
    %v63 = vsub.f32 %v59, %v61
    %v64 = vmul.f32 %v62, %v62
    %v65 = vmul.f32 %v63, %v63
    %p66 = scmp.eq.s32.totalorder 0, 0
    // Predicated region
    $region18: #{tpu_custom_call.1} parent=1 // pred_check
      %p67 = pneg %p66
    $region19: #{tpu_custom_call.1} parent=1 // pred_check_branch
      %69 = sbr.rel (%p67) target = $region21
    $region20: #{tpu_custom_call.1} parent=1 // pred_region
      %70 = vst [vmem:[#allocation2] sm:$0x77] %v64
      %71 = vst [vmem:[#allocation2 + $0x8] sm:$0x77] %v65
    $region21: #{tpu_custom_call.1} parent=1 // pred_fallthru
      _
    %p72 = scmp.ne.s32.totalorder 0, 0
    // Predicated region
    $region22: #{tpu_custom_call.1} parent=1 // pred_check
      %p73 = pneg %p72
    $region23: #{tpu_custom_call.1} parent=1 // pred_check_branch
      %75 = sbr.rel (%p73) target = $region25
    $region24: #{tpu_custom_call.1} parent=1 // pred_region
      %v76 = vld [vmem:[#allocation2] sm:$0x77]
      %v77 = vld [vmem:[#allocation2 + $0x8] sm:$0x77]
      %v78 = vadd.f32 %v76, %v64
      %v79 = vadd.f32 %v77, %v65
      %80 = vst [vmem:[#allocation2] sm:$0x77] %v78
      %81 = vst [vmem:[#allocation2 + $0x8] sm:$0x77] %v79
    $region25: #{tpu_custom_call.1} parent=1 // pred_fallthru
      _
    // Predicated region
    $region26: #{tpu_custom_call.1} parent=1 // pred_check
      %p82 = pneg %p66
    $region27: #{tpu_custom_call.1} parent=1 // pred_check_branch
      %84 = sbr.rel (%p82) target = $region29
    $region28: #{tpu_custom_call.1} parent=1 // pred_region
      %v85 = vld [vmem:[#allocation2] sm:$0x77]
      %v86 = vld [vmem:[#allocation2 + $0x8] sm:$0x77]
      %89 = vst [vmem:[#allocation1] ss:$2 sm:$0xff] %v85
      %s90 = scalar_lea.vmem [#allocation1], 16
      %91 = vst [vmem:[%s90] ss:$2 sm:$0xff] %v86
      %v92 = vld.sshfl [vmem:[#allocation1] sm:$0xff pattern:$0x75316420]
      %v93 = vld.sshfl [vmem:[#allocation1 + $0x8] sm:$0xff pattern:$0x75316420]
      %v94 = vld.sshfl [vmem:[#allocation1 + $0x10] sm:$0xff pattern:$0x75316420]
      %v95 = vld.sshfl [vmem:[#allocation1 + $0x18] sm:$0xff pattern:$0x75316420]
      %vm100 = vcmask 1042432
      %v101 = vsel %vm100, %v92, 0.0
      %v102 = vsel %vm100, %v93, 0.0
      %v103 = vadd.f32 %v101, %v102
      %v104 = vsel %vm100, %v94, 0.0
      %v105 = vadd.f32 %v103, %v104
      %v106 = vsel %vm100, %v95, 0.0
      %v107 = vadd.f32 %v105, %v106
      %108 = vadd.xlane.f32.xlu0 %v107
      %v109 = vpop.xlane.xlu0 %108
      %v110 = vrot.slane %v109, 4
      %v111 = vadd.f32 %v109, %v110
      %v112 = vrot.slane %v111, 2
      %v113 = vadd.f32 %v111, %v112
      %v114 = vrot.slane %v113, 1
      %v115 = vadd.f32 %v113, %v114
      %s116 = vtos %v115
      %v117 = vstv %s116
      %vm118 = vcmask 0
      %119 = vst.msk [vmem:[#allocation8] sm:$0x1] %vm118, %v117
    $region29: #{tpu_custom_call.1} parent=1 // pred_fallthru
      _
    // Predicated region
    $region30: #{tpu_custom_call.1} parent=1 // pred_check
      _
    $region31: #{tpu_custom_call.1} parent=1 // pred_check_branch
      %121 = sbr.rel (0) target = $region33
    $region32: #{tpu_custom_call.1} parent=1 // pred_region
      %123 = vsyncadd [#allocation5], 0
      %s125 = sshll.u32 [#allocation8], 4
      %s126 = int_to_ptr.vmem [resolvable:$true] %s125
      %s127 = sshll.u32 %s2, 4
      %s128 = int_to_ptr.hbm [resolvable:$true] %s127
      %130 = dma.vmem_to_hbm [thread:$0]  %s126, 16, %s128, [#allocation5]
    $region33: #{tpu_custom_call.1} parent=1 // pred_fallthru
      _
    // Predicated region
    $region34: #{tpu_custom_call.1} parent=1 // pred_check
      _
    $region35: #{tpu_custom_call.1} parent=1 // pred_check_branch
      %132 = sbr.rel (0) target = $region37
    $region36: #{tpu_custom_call.1} parent=1 // pred_region
      %134 = dma.done [#allocation5], 16
    $region37: #{tpu_custom_call.1} parent=1 // pred_fallthru
      _
    %135 = vsyncpa [#allocation4], 1
    %136 = vsyncpa [#allocation7], 1
    %137 = vsyncpa [#allocation5], 1

</llo_original>
